<compile_context>
chip_gen: v7x
topology: tpu7x:2x2x1
jax: 0.10.0
libtpu: 0.0.40
codegen_flags: <defaults>
</compile_context>

<pallas_src>
import jax
import jax.numpy as jnp
from jax.experimental import pallas as pl
from jax.experimental.pallas import tpu as pltpu

BN_EPS = 1e-5


def _round_up(n, m):
    return ((n + m - 1) // m) * m


# ---------------------------------------------------------------------------
# kernel
# ---------------------------------------------------------------------------
def _mlp_kernel(xT_ref,
                w1_ref, t1_ref,
                w2_ref, t2_ref,
                w3_ref, t3_ref,
                w4_ref, b4_ref,
                o_ref):
    # Activations are [features, batch_tile]; batch on the lane axis.
    x = xT_ref[...]                                                   # [in, TB] bf16

    # BN scale is pre-folded into the weights; only the shift remains.
    h = jnp.dot(w1_ref[...], x, preferred_element_type=jnp.float32)   # [64, TB] f32
    h = jnp.maximum(h + t1_ref[...], 0.0)                             # BN1 shift + ReLU

    h = jnp.dot(w2_ref[...], h.astype(jnp.bfloat16),
                preferred_element_type=jnp.float32)                   # [32, TB]
    h = jnp.maximum(h + t2_ref[...], 0.0)                             # BN2 shift + ReLU

    h = jnp.dot(w3_ref[...], h.astype(jnp.bfloat16),
                preferred_element_type=jnp.float32)                   # [16, TB]
    h = jnp.maximum(h + t3_ref[...], 0.0)                             # BN3 shift + ReLU

    out = jnp.dot(w4_ref[...], h.astype(jnp.bfloat16),
                  preferred_element_type=jnp.float32)                 # [1, TB]
    o_ref[...] = out + b4_ref[...]                                    # final Linear


# ---------------------------------------------------------------------------
# host-side parameter folding (BN running stats + linear bias -> W', t)
# ---------------------------------------------------------------------------
def fold_params(params):
    def fold(w, b, g, be, m, v):
        s = (g / jnp.sqrt(v + BN_EPS)).astype(jnp.float32)
        w_folded = (w.astype(jnp.float32) * s[:, None]).astype(jnp.bfloat16)
        t = ((b - m) * s + be).reshape(-1, 1).astype(jnp.float32)
        return w_folded, t

    w1, t1 = fold(params["w1"], params["b1"], params["g1"],
                  params["be1"], params["m1"], params["v1"])
    w2, t2 = fold(params["w2"], params["b2"], params["g2"],
                  params["be2"], params["m2"], params["v2"])
    w3, t3 = fold(params["w3"], params["b3"], params["g3"],
                  params["be3"], params["m3"], params["v3"])
    w4 = params["w4"].astype(jnp.bfloat16)                       # [1, 16]
    b4 = params["b4"].reshape(1, 1).astype(jnp.float32)
    return (w1, t1, w2, t2, w3, t3, w4, b4)


# ---------------------------------------------------------------------------
# feature-major entry point (native kernel layout: [in_dim, B] bf16)
# ---------------------------------------------------------------------------
def loan_prediction_forward_feature_major(xT, folded, *, tb=4096):
    """xT: [in_dim, B] bf16 (batch on the lane axis). folded: fold_params(...)."""
    in_dim, B = xT.shape

    # Pad the batch only to a multiple of 128 (not TB); Pallas handles a
    # partial last block, so padding waste is bounded by 127 samples.
    B_pad = _round_up(B, 128)
    if B_pad != B:
        xT = jnp.pad(xT, ((0, 0), (0, B_pad - B)))

    # Tile target: large enough to amortize ~0.35us/grid-step overhead, but
    # keep >= 2 grid steps when the batch allows it (v7x: 2 TensorCores).
    if B_pad >= 256:
        tb_cap = _round_up(pl.cdiv(B_pad, 2), 128)
    else:
        tb_cap = B_pad
    TB = max(128, min(_round_up(tb, 128), tb_cap))
    num_tiles = pl.cdiv(B_pad, TB)

    consts = folded

    def const_spec(a):
        # full array, VMEM-resident across all grid steps (no re-DMA)
        return pl.BlockSpec(a.shape, lambda i: (0, 0))

    weight_bytes = sum(int(a.size) * a.dtype.itemsize for a in consts)
    cost = pl.CostEstimate(
        flops=2 * B_pad * (in_dim * 64 + 64 * 32 + 32 * 16 + 16 * 1),
        transcendentals=0,
        bytes_accessed=in_dim * B_pad * 2 + B_pad * 4 + weight_bytes,
    )

    out_pad = pl.pallas_call(
        _mlp_kernel,
        out_shape=jax.ShapeDtypeStruct((1, B_pad), jnp.float32),
        grid=(num_tiles,),
        in_specs=[pl.BlockSpec((in_dim, TB), lambda i: (0, i))]
                 + [const_spec(a) for a in consts],
        out_specs=pl.BlockSpec((1, TB), lambda i: (0, i)),
        compiler_params=pltpu.CompilerParams(
            dimension_semantics=("parallel",),   # v7x: shard batch over both TCs
            vmem_limit_bytes=32 * 1024 * 1024,   # safe budget on v5e/v6e/v7x
        ),
        cost_estimate=cost,
    )(xT, *consts)

    return out_pad[0, :B].reshape(B, 1)


# ---------------------------------------------------------------------------
# PyTorch-layout convenience wrapper ([B, in_dim] f32, weights [out, in])
# ---------------------------------------------------------------------------
def loan_prediction_forward(x, params, tb=4096):
    folded = fold_params(params)
    # NOTE: this transpose+cast is a separate XLA pass over x; callers with a
    # feature-major producer should call loan_prediction_forward_feature_major
    # directly (or fuse the transpose upstream) to avoid the extra HBM pass.
    xT = x.T.astype(jnp.bfloat16)
    return loan_prediction_forward_feature_major(xT, folded, tb=tb)


# ---------------------------------------------------------------------------
# references for validation
# ---------------------------------------------------------------------------
def _reference_forward_f32(x, params):
    """Pure-f32 eval-mode PyTorch semantics."""
    def bn(z, g, b, m, v):
        return (z - m) / jnp.sqrt(v + BN_EPS) * g + b
    h = x @ params["w1"].T + params["b1"]
    h = jnp.maximum(bn(h, params["g1"], params["be1"], params["m1"], params["v1"]), 0.0)
    h = h @ params["w2"].T + params["b2"]
    h = jnp.maximum(bn(h, params["g2"], params["be2"], params["m2"], params["v2"]), 0.0)
    h = h @ params["w3"].T + params["b3"]
    h = jnp.maximum(bn(h, params["g3"], params["be3"], params["m3"], params["v3"]), 0.0)
    return h @ params["w4"].T + params["b4"]


def _reference_forward_bf16(x, params):
    """Mirrors the kernel numerics (BN scale folded into bf16 weights,
    bf16 dot operands, f32 accumulate)."""
    def fold(w, b, g, be, m, v):
        s = g / jnp.sqrt(v + BN_EPS)
        return (w * s[:, None]).astype(jnp.bfloat16), (b - m) * s + be

    def layer(h, wf, t):
        z = jnp.dot(h.astype(jnp.bfloat16), wf.T, preferred_element_type=jnp.float32)
        return jnp.maximum(z + t, 0.0)

    w1f, t1 = fold(params["w1"], params["b1"], params["g1"],
                   params["be1"], params["m1"], params["v1"])
    w2f, t2 = fold(params["w2"], params["b2"], params["g2"],
                   params["be2"], params["m2"], params["v2"])
    w3f, t3 = fold(params["w3"], params["b3"], params["g3"],
                   params["be3"], params["m3"], params["v3"])
    h = layer(x, w1f, t1)
    h = layer(h, w2f, t2)
    h = layer(h, w3f, t3)
    return jnp.dot(h.astype(jnp.bfloat16), params["w4"].astype(jnp.bfloat16).T,
                   preferred_element_type=jnp.float32) + params["b4"]


def init_params(key, input_dim):
    dims = [(input_dim, 64), (64, 32), (32, 16), (16, 1)]
    params = {}
    for i, (fi, fo) in enumerate(dims, start=1):
        key, kw, kb = jax.random.split(key, 3)
        bound = 1.0 / jnp.sqrt(fi)
        # PyTorch nn.Linear layout: [out_features, in_features]
        params[f"w{i}"] = jax.random.uniform(kw, (fo, fi), jnp.float32, -bound, bound)
        params[f"b{i}"] = jax.random.uniform(kb, (fo,), jnp.float32, -bound, bound)
    for i, fo in enumerate([64, 32, 16], start=1):
        key, kg, kb, km, kv = jax.random.split(key, 5)
        params[f"g{i}"] = 1.0 + 0.1 * jax.random.normal(kg, (fo,), jnp.float32)
        params[f"be{i}"] = 0.1 * jax.random.normal(kb, (fo,), jnp.float32)
        params[f"m{i}"] = 0.1 * jax.random.normal(km, (fo,), jnp.float32)
        params[f"v{i}"] = 1.0 + 0.1 * jax.random.uniform(kv, (fo,), jnp.float32)
    return params


if __name__ == "__main__":
    key = jax.random.PRNGKey(0)
    kx, kp, kx2 = jax.random.split(key, 3)

    batch, input_dim = 8, 32
    x = jax.random.normal(kx, (batch, input_dim), jnp.float32)
    params = init_params(kp, input_dim)

    # --- small-batch check (single tile) ---
    out = loan_prediction_forward(x, params)
    out = jax.block_until_ready(out)
    assert out.shape == (batch, 1)

    ref_bf16 = _reference_forward_bf16(x, params)   # mirrors kernel numerics
    ref_f32 = _reference_forward_f32(x, params)     # exact eval-mode semantics
    assert jnp.allclose(out, ref_bf16, atol=5e-3, rtol=5e-3), "mismatch vs bf16 reference"
    assert jnp.allclose(out, ref_f32, atol=5e-2, rtol=5e-2), "mismatch vs f32 reference"

    # --- multi-tile check (2 grid steps, partial last block) ---
    batch2 = 300
    x2 = jax.random.normal(kx2, (batch2, input_dim), jnp.float32)
    out2 = jax.block_until_ready(loan_prediction_forward(x2, params))
    assert out2.shape == (batch2, 1)
    assert jnp.allclose(out2, _reference_forward_bf16(x2, params), atol=5e-3, rtol=5e-3), \
        "multi-tile mismatch vs bf16 reference"
    assert jnp.allclose(out2, _reference_forward_f32(x2, params), atol=5e-2, rtol=5e-2), \
        "multi-tile mismatch vs f32 reference"

    print("KERNEL_OK")
</pallas_src>

<mosaic_0001>
module attributes {stable_mosaic.version = 11 : i64} {
  func.func @_mlp_kernel(%arg0: i32, %arg1: memref<32x128xbf16, #tpu.memory_space<vmem>>, %arg2: memref<64x32xbf16, #tpu.memory_space<vmem>>, %arg3: memref<64x1xf32, #tpu.memory_space<vmem>>, %arg4: memref<32x64xbf16, #tpu.memory_space<vmem>>, %arg5: memref<32x1xf32, #tpu.memory_space<vmem>>, %arg6: memref<16x32xbf16, #tpu.memory_space<vmem>>, %arg7: memref<16x1xf32, #tpu.memory_space<vmem>>, %arg8: memref<1x16xbf16, #tpu.memory_space<vmem>>, %arg9: memref<1x1xf32, #tpu.memory_space<vmem>>, %arg10: memref<1x128xf32, #tpu.memory_space<vmem>>) attributes {dimension_semantics = [#tpu.dimension_semantics<parallel>], iteration_bounds = array<i64: 1>, scalar_prefetch = 0 : i64, scratch_operands = 0 : i64, tpu.core_type = #tpu.core_type<tc>, window_params = [{transform_indices = @transform_0, window_bounds = array<i64: 32, 128>}, {pipeline_mode = #tpu.pipeline_mode<synchronous>, transform_indices = @transform_1, window_bounds = array<i64: 64, 32>}, {pipeline_mode = #tpu.pipeline_mode<synchronous>, transform_indices = @transform_2, window_bounds = array<i64: 64, 1>}, {pipeline_mode = #tpu.pipeline_mode<synchronous>, transform_indices = @transform_3, window_bounds = array<i64: 32, 64>}, {pipeline_mode = #tpu.pipeline_mode<synchronous>, transform_indices = @transform_4, window_bounds = array<i64: 32, 1>}, {pipeline_mode = #tpu.pipeline_mode<synchronous>, transform_indices = @transform_5, window_bounds = array<i64: 16, 32>}, {pipeline_mode = #tpu.pipeline_mode<synchronous>, transform_indices = @transform_6, window_bounds = array<i64: 16, 1>}, {pipeline_mode = #tpu.pipeline_mode<synchronous>, transform_indices = @transform_7, window_bounds = array<i64: 1, 16>}, {pipeline_mode = #tpu.pipeline_mode<synchronous>, transform_indices = @transform_8, window_bounds = array<i64: 1, 1>}, {transform_indices = @transform_9, window_bounds = array<i64: 1, 128>}]} {
    %c0 = arith.constant 0 : index
    %c0_0 = arith.constant 0 : index
    %0 = vector.load %arg1[%c0, %c0_0] : memref<32x128xbf16, #tpu.memory_space<vmem>>, vector<32x128xbf16>
    %c0_1 = arith.constant 0 : index
    %c0_2 = arith.constant 0 : index
    %1 = vector.load %arg2[%c0_1, %c0_2] : memref<64x32xbf16, #tpu.memory_space<vmem>>, vector<64x32xbf16>
    %cst = arith.constant dense<0.000000e+00> : vector<64x128xf32>
    %2 = tpu.matmul %1, %0, %cst {dimension_numbers = #tpu.dot_dimension_numbers<[1], [0], [0], [1], [0, 0, 1, 1], [], []>} : vector<64x32xbf16>, vector<32x128xbf16>, vector<64x128xf32> -> vector<64x128xf32>
    %c0_3 = arith.constant 0 : index
    %c0_4 = arith.constant 0 : index
    %3 = vector.load %arg3[%c0_3, %c0_4] : memref<64x1xf32, #tpu.memory_space<vmem>>, vector<64x1xf32>
    %4 = vector.broadcast %3 : vector<64x1xf32> to vector<64x128xf32>
    %5 = arith.addf %2, %4 : vector<64x128xf32>
    %cst_5 = arith.constant 0.000000e+00 : f32
    %6 = vector.broadcast %cst_5 : f32 to vector<64x128xf32>
    %7 = arith.maximumf %5, %6 : vector<64x128xf32>
    %c0_6 = arith.constant 0 : index
    %c0_7 = arith.constant 0 : index
    %8 = vector.load %arg4[%c0_6, %c0_7] : memref<32x64xbf16, #tpu.memory_space<vmem>>, vector<32x64xbf16>
    %9 = arith.truncf %7 : vector<64x128xf32> to vector<64x128xbf16>
    %cst_8 = arith.constant dense<0.000000e+00> : vector<32x128xf32>
    %10 = tpu.matmul %8, %9, %cst_8 {dimension_numbers = #tpu.dot_dimension_numbers<[1], [0], [0], [1], [0, 0, 1, 1], [], []>} : vector<32x64xbf16>, vector<64x128xbf16>, vector<32x128xf32> -> vector<32x128xf32>
    %c0_9 = arith.constant 0 : index
    %c0_10 = arith.constant 0 : index
    %11 = vector.load %arg5[%c0_9, %c0_10] : memref<32x1xf32, #tpu.memory_space<vmem>>, vector<32x1xf32>
    %12 = vector.broadcast %11 : vector<32x1xf32> to vector<32x128xf32>
    %13 = arith.addf %10, %12 : vector<32x128xf32>
    %cst_11 = arith.constant 0.000000e+00 : f32
    %14 = vector.broadcast %cst_11 : f32 to vector<32x128xf32>
    %15 = arith.maximumf %13, %14 : vector<32x128xf32>
    %c0_12 = arith.constant 0 : index
    %c0_13 = arith.constant 0 : index
    %16 = vector.load %arg6[%c0_12, %c0_13] : memref<16x32xbf16, #tpu.memory_space<vmem>>, vector<16x32xbf16>
    %17 = arith.truncf %15 : vector<32x128xf32> to vector<32x128xbf16>
    %cst_14 = arith.constant dense<0.000000e+00> : vector<16x128xf32>
    %18 = tpu.matmul %16, %17, %cst_14 {dimension_numbers = #tpu.dot_dimension_numbers<[1], [0], [0], [1], [0, 0, 1, 1], [], []>} : vector<16x32xbf16>, vector<32x128xbf16>, vector<16x128xf32> -> vector<16x128xf32>
    %c0_15 = arith.constant 0 : index
    %c0_16 = arith.constant 0 : index
    %19 = vector.load %arg7[%c0_15, %c0_16] : memref<16x1xf32, #tpu.memory_space<vmem>>, vector<16x1xf32>
    %20 = vector.broadcast %19 : vector<16x1xf32> to vector<16x128xf32>
    %21 = arith.addf %18, %20 : vector<16x128xf32>
    %cst_17 = arith.constant 0.000000e+00 : f32
    %22 = vector.broadcast %cst_17 : f32 to vector<16x128xf32>
    %23 = arith.maximumf %21, %22 : vector<16x128xf32>
    %c0_18 = arith.constant 0 : index
    %c0_19 = arith.constant 0 : index
    %24 = vector.load %arg8[%c0_18, %c0_19] : memref<1x16xbf16, #tpu.memory_space<vmem>>, vector<1x16xbf16>
    %25 = arith.truncf %23 : vector<16x128xf32> to vector<16x128xbf16>
    %cst_20 = arith.constant dense<0.000000e+00> : vector<1x128xf32>
    %26 = tpu.matmul %24, %25, %cst_20 {dimension_numbers = #tpu.dot_dimension_numbers<[1], [0], [0], [1], [0, 0, 1, 1], [], []>} : vector<1x16xbf16>, vector<16x128xbf16>, vector<1x128xf32> -> vector<1x128xf32>
    %c0_21 = arith.constant 0 : index
    %c0_22 = arith.constant 0 : index
    %27 = vector.load %arg9[%c0_21, %c0_22] : memref<1x1xf32, #tpu.memory_space<vmem>>, vector<1x1xf32>
    %28 = vector.broadcast %27 : vector<1x1xf32> to vector<1x128xf32>
    %29 = arith.addf %26, %28 : vector<1x128xf32>
    %c0_23 = arith.constant 0 : index
    %c0_24 = arith.constant 0 : index
    %30 = vector.load %arg10[%c0_23, %c0_24] : memref<1x128xf32, #tpu.memory_space<vmem>>, vector<1x128xf32>
    tpu.vector_store %arg10[%c0_23, %c0_24], %29 {strides = array<i32>} : memref<1x128xf32, #tpu.memory_space<vmem>>, vector<1x128xf32>,
    return
  }
  func.func @transform_0(%arg0: i32) -> (i32, i32) {
    %c0_i32 = arith.constant 0 : i32
    %c0_i32_0 = arith.constant 0 : i32
    return %c0_i32, %arg0 : i32, i32
  }
  func.func @transform_1(%arg0: i32) -> (i32, i32) {
    %c0_i32 = arith.constant 0 : i32
    %c0_i32_0 = arith.constant 0 : i32
    %c0_i32_1 = arith.constant 0 : i32
    return %c0_i32, %c0_i32_0 : i32, i32
  }
  func.func @transform_2(%arg0: i32) -> (i32, i32) {
    %c0_i32 = arith.constant 0 : i32
    %c0_i32_0 = arith.constant 0 : i32
    %c0_i32_1 = arith.constant 0 : i32
    return %c0_i32, %c0_i32_0 : i32, i32
  }
  func.func @transform_3(%arg0: i32) -> (i32, i32) {
    %c0_i32 = arith.constant 0 : i32
    %c0_i32_0 = arith.constant 0 : i32
    %c0_i32_1 = arith.constant 0 : i32
    return %c0_i32, %c0_i32_0 : i32, i32
  }
  func.func @transform_4(%arg0: i32) -> (i32, i32) {
    %c0_i32 = arith.constant 0 : i32
    %c0_i32_0 = arith.constant 0 : i32
    %c0_i32_1 = arith.constant 0 : i32
    return %c0_i32, %c0_i32_0 : i32, i32
  }
  func.func @transform_5(%arg0: i32) -> (i32, i32) {
    %c0_i32 = arith.constant 0 : i32
    %c0_i32_0 = arith.constant 0 : i32
    %c0_i32_1 = arith.constant 0 : i32
    return %c0_i32, %c0_i32_0 : i32, i32
  }
  func.func @transform_6(%arg0: i32) -> (i32, i32) {
    %c0_i32 = arith.constant 0 : i32
    %c0_i32_0 = arith.constant 0 : i32
    %c0_i32_1 = arith.constant 0 : i32
    return %c0_i32, %c0_i32_0 : i32, i32
  }
  func.func @transform_7(%arg0: i32) -> (i32, i32) {
    %c0_i32 = arith.constant 0 : i32
    %c0_i32_0 = arith.constant 0 : i32
    %c0_i32_1 = arith.constant 0 : i32
    return %c0_i32, %c0_i32_0 : i32, i32
  }
  func.func @transform_8(%arg0: i32) -> (i32, i32) {
    %c0_i32 = arith.constant 0 : i32
    %c0_i32_0 = arith.constant 0 : i32
    %c0_i32_1 = arith.constant 0 : i32
    return %c0_i32, %c0_i32_0 : i32, i32
  }
  func.func @transform_9(%arg0: i32) -> (i32, i32) {
    %c0_i32 = arith.constant 0 : i32
    %c0_i32_0 = arith.constant 0 : i32
    return %c0_i32, %arg0 : i32, i32
  }
}

</mosaic_0001>

<llo_original>
// kernel: tpu_custom_call.1
$region0: #{tpu_custom_call.1}
  #allocation0 [shape = 'u32[]', space=smem, size = 0x4, offset = 0x4, fixed_abs, tag = 'smem constant byte address 0x4 - core index']
  #allocation1 [shape = 'u32[144,128]{1,0:T(1,128)}', space=vmem, size = 0x12000, scoped, tag = 'internal scratch']
  #allocation2 [shape = 'f32[1,1]{1,0:T(1,128)S(1)}', space=vmem, size = 0x200, scoped, tag = 'scoped memory for tpu_custom_call.1']
  %s0 = inlined_call_operand.vmem [shape: bf16[32,128], index: 0, kind: input, shape index: {}]
  %s1 = inlined_call_operand.vmem [shape: bf16[64,32], index: 1, kind: input, shape index: {}]
  %s2 = inlined_call_operand.vmem [shape: f32[64,1], index: 2, kind: input, shape index: {}]
  %s3 = inlined_call_operand.vmem [shape: bf16[32,64], index: 3, kind: input, shape index: {}]
  %s4 = inlined_call_operand.vmem [shape: f32[32,1], index: 4, kind: input, shape index: {}]
  %s5 = inlined_call_operand.vmem [shape: bf16[16,32], index: 5, kind: input, shape index: {}]
  %s6 = inlined_call_operand.vmem [shape: f32[16,1], index: 6, kind: input, shape index: {}]
  %s7 = inlined_call_operand.vmem [shape: bf16[1,16], index: 7, kind: input, shape index: {}]
  %s8 = inlined_call_operand.<no memory space> [shape: f32[1,1], index: 8, kind: input, shape index: {}]
  %s9 = inlined_call_operand.hbm [shape: f32[1,128], index: 9, kind: output, shape index: {}]
  %s10 = sld [smem:[#allocation0]]
  $region46: #{tpu_custom_call.1} parent=0
    _
  %s12 = ssub.s32 1, %s10
  %s13 = scalar_select 0, %s12, %s10
  %v14 = vstv %s8
  %15 = vst [vmem:[#allocation2] sm:$0x1] %v14
  $region1: #{tpu_custom_call.1} parent=0
    #allocation3 [shape = 'u8[512]{0}', space=vmem, size = 0x400, scoped, tag = 'output window, operand 0, single buffered']
    #allocation4 [shape = 's32[1]{0}', space=sflag, size = 0x4, scoped, tag = 'scoped memory for tpu_custom_call.1']
    %16 = vsyncpa [#allocation4], 0
    // Predicated region
    $region2: #{tpu_custom_call.1} parent=1 // pred_check
      _
    $region3: #{tpu_custom_call.1} parent=1 // pred_check_branch
      %18 = sbr.rel (0) target = $region5
    $region4: #{tpu_custom_call.1} parent=1 // pred_region
      _
    $region5: #{tpu_custom_call.1} parent=1 // pred_fallthru
      _
    // Predicated region
    $region6: #{tpu_custom_call.1} parent=1 // pred_check
      _
    $region7: #{tpu_custom_call.1} parent=1 // pred_check_branch
      %20 = sbr.rel (0) target = $region9
    $region8: #{tpu_custom_call.1} parent=1 // pred_region
      _
    $region9: #{tpu_custom_call.1} parent=1 // pred_fallthru
      _
    // Predicated region
    $region10: #{tpu_custom_call.1} parent=1 // pred_check
      _
    $region11: #{tpu_custom_call.1} parent=1 // pred_check_branch
      %22 = sbr.rel (0) target = $region13
    $region12: #{tpu_custom_call.1} parent=1 // pred_region
      _
    $region13: #{tpu_custom_call.1} parent=1 // pred_fallthru
      _
    // Predicated region
    $region14: #{tpu_custom_call.1} parent=1 // pred_check
      _
    $region15: #{tpu_custom_call.1} parent=1 // pred_check_branch
      %24 = sbr.rel (0) target = $region17
    $region16: #{tpu_custom_call.1} parent=1 // pred_region
      _
    $region17: #{tpu_custom_call.1} parent=1 // pred_fallthru
      _
    // Predicated region
    $region18: #{tpu_custom_call.1} parent=1 // pred_check
      _
    $region19: #{tpu_custom_call.1} parent=1 // pred_check_branch
      %26 = sbr.rel (0) target = $region21
    $region20: #{tpu_custom_call.1} parent=1 // pred_region
      _
    $region21: #{tpu_custom_call.1} parent=1 // pred_fallthru
      _
    // Predicated region
    $region22: #{tpu_custom_call.1} parent=1 // pred_check
      _
    $region23: #{tpu_custom_call.1} parent=1 // pred_check_branch
      %28 = sbr.rel (0) target = $region25
    $region24: #{tpu_custom_call.1} parent=1 // pred_region
      _
    $region25: #{tpu_custom_call.1} parent=1 // pred_fallthru
      _
    // Predicated region
    $region26: #{tpu_custom_call.1} parent=1 // pred_check
      _
    $region27: #{tpu_custom_call.1} parent=1 // pred_check_branch
      %30 = sbr.rel (0) target = $region29
    $region28: #{tpu_custom_call.1} parent=1 // pred_region
      _
    $region29: #{tpu_custom_call.1} parent=1 // pred_fallthru
      _
    // Predicated region
    $region30: #{tpu_custom_call.1} parent=1 // pred_check
      _
    $region31: #{tpu_custom_call.1} parent=1 // pred_check_branch
      %32 = sbr.rel (0) target = $region33
    $region32: #{tpu_custom_call.1} parent=1 // pred_region
      _
    $region33: #{tpu_custom_call.1} parent=1 // pred_fallthru
      _
    // Predicated region
    $region34: #{tpu_custom_call.1} parent=1 // pred_check
      _
    $region35: #{tpu_custom_call.1} parent=1 // pred_check_branch
      %34 = sbr.rel (0) target = $region37
    $region36: #{tpu_custom_call.1} parent=1 // pred_region
      _
    $region37: #{tpu_custom_call.1} parent=1 // pred_fallthru
      _
    %v36 = vld [vmem:[%s0] sm:$0xf]
    %v37 = vld [vmem:[%s0 + $0x4] sm:$0xf]
    %v38 = vld [vmem:[%s0 + $0x8] sm:$0xf]
    %v39 = vld [vmem:[%s0 + $0xc] sm:$0xf]
    %v40 = vld [vmem:[%s1] sm:$0xf]
    %v41 = vld [vmem:[%s1 + $0x4] sm:$0xf]
    %v42 = vld [vmem:[%s1 + $0x8] sm:$0xf]
    %v43 = vld [vmem:[%s1 + $0xc] sm:$0xf]
    %v44 = vld [vmem:[%s1 + $0x10] sm:$0xf]
    %v45 = vld [vmem:[%s1 + $0x14] sm:$0xf]
    %v46 = vld [vmem:[%s1 + $0x18] sm:$0xf]
    %v47 = vld [vmem:[%s1 + $0x1c] sm:$0xf]
    %v48 = vld [vmem:[%s2] sm:$0xff]
    %v49 = vld [vmem:[%s2 + $0x8] sm:$0xff]
    %v50 = vld [vmem:[%s2 + $0x10] sm:$0xff]
    %v51 = vld [vmem:[%s2 + $0x18] sm:$0xff]
    %v52 = vld [vmem:[%s2 + $0x20] sm:$0xff]
    %v53 = vld [vmem:[%s2 + $0x28] sm:$0xff]
    %v54 = vld [vmem:[%s2 + $0x30] sm:$0xff]
    %v55 = vld [vmem:[%s2 + $0x38] sm:$0xff]
    %57 = vset.pattern.permute.xlu0 0
    %58 = vperm.xlu0 %57, %v48
    %v59 = vpop.permute.xlu0 %58
    %62 = vset.pattern.permute.xlu0 0
    %63 = vperm.xlu0 %62, %v49
    %v64 = vpop.permute.xlu0 %63
    %67 = vset.pattern.permute.xlu0 0
    %68 = vperm.xlu0 %67, %v50
    %v69 = vpop.permute.xlu0 %68
    %72 = vset.pattern.permute.xlu0 0
    %73 = vperm.xlu0 %72, %v51
    %v74 = vpop.permute.xlu0 %73
    %77 = vset.pattern.permute.xlu0 0
    %78 = vperm.xlu0 %77, %v52
    %v79 = vpop.permute.xlu0 %78
    %82 = vset.pattern.permute.xlu0 0
    %83 = vperm.xlu0 %82, %v53
    %v84 = vpop.permute.xlu0 %83
    %87 = vset.pattern.permute.xlu0 0
    %88 = vperm.xlu0 %87, %v54
    %v89 = vpop.permute.xlu0 %88
    %92 = vset.pattern.permute.xlu0 0
    %93 = vperm.xlu0 %92, %v55
    %v94 = vpop.permute.xlu0 %93
    %v104 = vunpack.c.l.b16 %v40
    %v105 = vunpack.c.l.b16 %v41
    %v106 = vunpack.c.l.b16 %v42
    %v107 = vunpack.c.l.b16 %v43
    %v108 = vunpack.c.l.b16 %v44
    %v109 = vunpack.c.l.b16 %v45
    %v110 = vunpack.c.l.b16 %v46
    %v111 = vunpack.c.l.b16 %v47
    %v112 = vpack.c.b16 %v105, %v104
    %v113 = vpack.c.b16 %v107, %v106
    %v114 = vpack.c.b16 %v109, %v108
    %v115 = vpack.c.b16 %v111, %v110
    %v120 = vunpack.c.l.b16 %v36
    %v121 = vunpack.c.l.b16 %v37
    %v122 = vunpack.c.l.b16 %v38
    %v123 = vunpack.c.l.b16 %v39
    %v124 = vpack.c.b16 %v121, %v120
    %v125 = vpack.c.b16 %v123, %v122
    %vm128 = vcmask 261120
    %v130 = vsel %vm128, %v112, 0
    %v133 = vsel %vm128, %v113, 0
    %v136 = vsel %vm128, %v114, 0
    %v139 = vsel %vm128, %v115, 0
    %141 = vmatprep.subr.bf16.mxu0 0
    %142 = vmatpush1.bf16.msra.mxu0 %v124
    %143 = vmatprep.subr.bf16.mxu0 0
    %144 = vmatpush1.bf16.msra.mxu0 %v125
    %145 = vmatprep.subr.bf16.mxu0 0
    %146 = vmatpush1.bf16.msra.mxu0 0
    %147 = vmatprep.subr.bf16.mxu0 0
    %148 = vmatpush1.bf16.msra.mxu0 0
    %149 = vmatprep.subr.bf16.mxu0 0
    %150 = vmatpush1.bf16.msra.mxu0 0
    %151 = vmatprep.subr.bf16.mxu0 0
    %152 = vmatpush1.bf16.msra.mxu0 0
    %153 = vmatprep.subr.bf16.mxu0 0
    %154 = vmatpush1.bf16.msra.mxu0 0
    %155 = vmatprep.subr.bf16.mxu0 0
    %156 = vmatpush1.bf16.msra.mxu0 0
    %157 = vmatprep.subr.bf16.mxu0 0
    %158 = vmatpush1.bf16.msra.mxu0 0
    %159 = vmatprep.subr.bf16.mxu0 0
    %160 = vmatpush1.bf16.msra.mxu0 0
    %161 = vmatprep.subr.bf16.mxu0 0
    %162 = vmatpush1.bf16.msra.mxu0 0
    %163 = vmatprep.subr.bf16.mxu0 0
    %164 = vmatpush1.bf16.msra.mxu0 0
    %165 = vmatprep.subr.bf16.mxu0 0
    %166 = vmatpush1.bf16.msra.mxu0 0
    %167 = vmatprep.subr.bf16.mxu0 0
    %168 = vmatpush1.bf16.msra.mxu0 0
    %169 = vmatprep.subr.bf16.mxu0 0
    %170 = vmatpush1.bf16.msra.mxu0 0
    %171 = vmatprep.subr.bf16.mxu0 0
    %172 = vmatpush1.bf16.msra.mxu0 0
    %173 = vmatprep.mubr.bf16.mxu0 0
    %174 = vmatmul.mubr.bf16.gmra.mrb[0].mxu0 %v130
    %v175 = vpop.f32.mrb[0].mxu0
    %v176 = vadd.f32 %v59, %v175
    %v177 = vpop.f32.mrb[0].mxu0
    %v178 = vpop.f32.mrb[0].mxu0
    %v179 = vadd.f32 %v64, %v178
    %v180 = vpop.f32.mrb[0].mxu0
    %181 = vmatprep.mubr.bf16.mxu0 0
    %182 = vmatmul.mubr.bf16.gmra.mrb[0].mxu0 %v133
    %v183 = vpop.f32.mrb[0].mxu0
    %v184 = vadd.f32 %v69, %v183
    %v185 = vpop.f32.mrb[0].mxu0
    %v186 = vpop.f32.mrb[0].mxu0
    %v187 = vadd.f32 %v74, %v186
    %v188 = vpop.f32.mrb[0].mxu0
    %189 = vmatprep.mubr.bf16.mxu0 0
    %190 = vmatmul.mubr.bf16.gmra.mrb[0].mxu0 %v136
    %v191 = vpop.f32.mrb[0].mxu0
    %v192 = vadd.f32 %v79, %v191
    %v193 = vpop.f32.mrb[0].mxu0
    %v194 = vpop.f32.mrb[0].mxu0
    %v195 = vadd.f32 %v84, %v194
    %v196 = vpop.f32.mrb[0].mxu0
    %197 = vmatprep.mubr.bf16.mxu0 0
    %198 = vmatmul.mubr.bf16.gmra.mrb[0].mxu0 %v139
    %v199 = vpop.f32.mrb[0].mxu0
    %v200 = vadd.f32 %v89, %v199
    %v201 = vpop.f32.mrb[0].mxu0
    %v202 = vpop.f32.mrb[0].mxu0
    %v203 = vadd.f32 %v94, %v202
    %v204 = vpop.f32.mrb[0].mxu0
    %205 = vdwg.mxu0
    %v206 = vmax.f32 %v176, 0.0
    %v207 = vmax.f32 %v179, 0.0
    %v208 = vmax.f32 %v184, 0.0
    %v209 = vmax.f32 %v187, 0.0
    %v210 = vmax.f32 %v192, 0.0
    %v211 = vmax.f32 %v195, 0.0
    %v212 = vmax.f32 %v200, 0.0
    %v213 = vmax.f32 %v203, 0.0
    %v214 = vld [vmem:[%s3] sm:$0xf]
    %v215 = vld [vmem:[%s3 + $0x4] sm:$0xf]
    %v216 = vld [vmem:[%s3 + $0x8] sm:$0xf]
    %v217 = vld [vmem:[%s3 + $0xc] sm:$0xf]
    %v218 = vpack.c.bf16 %v207, %v206
    %v219 = vpack.c.bf16 %v209, %v208
    %v220 = vpack.c.bf16 %v211, %v210
    %v221 = vpack.c.bf16 %v213, %v212
    %v222 = vld [vmem:[%s4] sm:$0xff]
    %v223 = vld [vmem:[%s4 + $0x8] sm:$0xff]
    %v224 = vld [vmem:[%s4 + $0x10] sm:$0xff]
    %v225 = vld [vmem:[%s4 + $0x18] sm:$0xff]
    %227 = vset.pattern.permute.xlu0 0
    %228 = vperm.xlu0 %227, %v222
    %v229 = vpop.permute.xlu0 %228
    %232 = vset.pattern.permute.xlu0 0
    %233 = vperm.xlu0 %232, %v223
    %v234 = vpop.permute.xlu0 %233
    %237 = vset.pattern.permute.xlu0 0
    %238 = vperm.xlu0 %237, %v224
    %v239 = vpop.permute.xlu0 %238
    %242 = vset.pattern.permute.xlu0 0
    %243 = vperm.xlu0 %242, %v225
    %v244 = vpop.permute.xlu0 %243
    %v250 = vunpack.c.l.b16 %v214
    %v251 = vunpack.c.l.b16 %v215
    %v252 = vunpack.c.l.b16 %v216
    %v253 = vunpack.c.l.b16 %v217
    %v254 = vpack.c.b16 %v251, %v250
    %v255 = vpack.c.b16 %v253, %v252
    %vm256 = vcmask 523264
    %v258 = vsel %vm256, %v254, 0
    %v261 = vsel %vm256, %v255, 0
    %263 = vmatprep.subr.bf16.mxu0 0
    %264 = vmatpush1.bf16.msra.mxu0 %v218
    %265 = vmatprep.subr.bf16.mxu0 0
    %266 = vmatpush1.bf16.msra.mxu0 %v219
    %267 = vmatprep.subr.bf16.mxu0 0
    %268 = vmatpush1.bf16.msra.mxu0 %v220
    %269 = vmatprep.subr.bf16.mxu0 0
    %270 = vmatpush1.bf16.msra.mxu0 %v221
    %271 = vmatprep.subr.bf16.mxu0 0
    %272 = vmatpush1.bf16.msra.mxu0 0
    %273 = vmatprep.subr.bf16.mxu0 0
    %274 = vmatpush1.bf16.msra.mxu0 0
    %275 = vmatprep.subr.bf16.mxu0 0
    %276 = vmatpush1.bf16.msra.mxu0 0
    %277 = vmatprep.subr.bf16.mxu0 0
    %278 = vmatpush1.bf16.msra.mxu0 0
    %279 = vmatprep.subr.bf16.mxu0 0
    %280 = vmatpush1.bf16.msra.mxu0 0
    %281 = vmatprep.subr.bf16.mxu0 0
    %282 = vmatpush1.bf16.msra.mxu0 0
    %283 = vmatprep.subr.bf16.mxu0 0
    %284 = vmatpush1.bf16.msra.mxu0 0
    %285 = vmatprep.subr.bf16.mxu0 0
    %286 = vmatpush1.bf16.msra.mxu0 0
    %287 = vmatprep.subr.bf16.mxu0 0
    %288 = vmatpush1.bf16.msra.mxu0 0
    %289 = vmatprep.subr.bf16.mxu0 0
    %290 = vmatpush1.bf16.msra.mxu0 0
    %291 = vmatprep.subr.bf16.mxu0 0
    %292 = vmatpush1.bf16.msra.mxu0 0
    %293 = vmatprep.subr.bf16.mxu0 0
    %294 = vmatpush1.bf16.msra.mxu0 0
    %295 = vmatprep.mubr.bf16.mxu0 0
    %296 = vmatmul.mubr.bf16.gmra.mrb[0].mxu0 %v258
    %v297 = vpop.f32.mrb[0].mxu0
    %v298 = vadd.f32 %v229, %v297
    %v299 = vpop.f32.mrb[0].mxu0
    %v300 = vpop.f32.mrb[0].mxu0
    %v301 = vadd.f32 %v234, %v300
    %v302 = vpop.f32.mrb[0].mxu0
    %303 = vmatprep.mubr.bf16.mxu0 0
    %304 = vmatmul.mubr.bf16.gmra.mrb[0].mxu0 %v261
    %v305 = vpop.f32.mrb[0].mxu0
    %v306 = vadd.f32 %v239, %v305
    %v307 = vpop.f32.mrb[0].mxu0
    %v308 = vpop.f32.mrb[0].mxu0
    %v309 = vadd.f32 %v244, %v308
    %v310 = vpop.f32.mrb[0].mxu0
    %311 = vdwg.mxu0
    %v312 = vmax.f32 %v298, 0.0
    %v313 = vmax.f32 %v301, 0.0
    %v314 = vmax.f32 %v306, 0.0
    %v315 = vmax.f32 %v309, 0.0
    %v316 = vld [vmem:[%s5] sm:$0xf]
    %v317 = vld [vmem:[%s5 + $0x4] sm:$0xf]
    %v318 = vpack.c.bf16 %v313, %v312
    %v319 = vpack.c.bf16 %v315, %v314
    %v320 = vld [vmem:[%s6] sm:$0xff]
    %v321 = vld [vmem:[%s6 + $0x8] sm:$0xff]
    %323 = vset.pattern.permute.xlu0 0
    %324 = vperm.xlu0 %323, %v320
    %v325 = vpop.permute.xlu0 %324
    %328 = vset.pattern.permute.xlu0 0
    %329 = vperm.xlu0 %328, %v321
    %v330 = vpop.permute.xlu0 %329
    %v334 = vunpack.c.l.b16 %v316
    %v335 = vunpack.c.l.b16 %v317
    %v336 = vpack.c.b16 %v335, %v334
    %v338 = vsel %vm128, %v336, 0
    %340 = vmatprep.subr.bf16.mxu0 0
    %341 = vmatpush1.bf16.msra.mxu0 %v318
    %342 = vmatprep.subr.bf16.mxu0 0
    %343 = vmatpush1.bf16.msra.mxu0 %v319
    %344 = vmatprep.subr.bf16.mxu0 0
    %345 = vmatpush1.bf16.msra.mxu0 0
    %346 = vmatprep.subr.bf16.mxu0 0
    %347 = vmatpush1.bf16.msra.mxu0 0
    %348 = vmatprep.subr.bf16.mxu0 0
    %349 = vmatpush1.bf16.msra.mxu0 0
    %350 = vmatprep.subr.bf16.mxu0 0
    %351 = vmatpush1.bf16.msra.mxu0 0
    %352 = vmatprep.subr.bf16.mxu0 0
    %353 = vmatpush1.bf16.msra.mxu0 0
    %354 = vmatprep.subr.bf16.mxu0 0
    %355 = vmatpush1.bf16.msra.mxu0 0
    %356 = vmatprep.subr.bf16.mxu0 0
    %357 = vmatpush1.bf16.msra.mxu0 0
    %358 = vmatprep.subr.bf16.mxu0 0
    %359 = vmatpush1.bf16.msra.mxu0 0
    %360 = vmatprep.subr.bf16.mxu0 0
    %361 = vmatpush1.bf16.msra.mxu0 0
    %362 = vmatprep.subr.bf16.mxu0 0
    %363 = vmatpush1.bf16.msra.mxu0 0
    %364 = vmatprep.subr.bf16.mxu0 0
    %365 = vmatpush1.bf16.msra.mxu0 0
    %366 = vmatprep.subr.bf16.mxu0 0
    %367 = vmatpush1.bf16.msra.mxu0 0
    %368 = vmatprep.subr.bf16.mxu0 0
    %369 = vmatpush1.bf16.msra.mxu0 0
    %370 = vmatprep.subr.bf16.mxu0 0
    %371 = vmatpush1.bf16.msra.mxu0 0
    %372 = vmatprep.mubr.bf16.mxu0 0
    %373 = vmatmul.mubr.bf16.gmra.mrb[0].mxu0 %v338
    %v374 = vpop.f32.mrb[0].mxu0
    %v375 = vadd.f32 %v325, %v374
    %v376 = vpop.f32.mrb[0].mxu0
    %v377 = vpop.f32.mrb[0].mxu0
    %v378 = vadd.f32 %v330, %v377
    %v379 = vpop.f32.mrb[0].mxu0
    %380 = vdwg.mxu0
    %v381 = vmax.f32 %v375, 0.0
    %v382 = vmax.f32 %v378, 0.0
    %v383 = vld [vmem:[%s7] sm:$0x1]
    %v384 = vpack.c.bf16 %v382, %v381
    %v385 = vld [vmem:[#allocation2] sm:$0x1]
    %387 = vset.pattern.permute.xlu0 0
    %388 = vperm.xlu0 %387, %v385
    %v389 = vpop.permute.xlu0 %388
    %v391 = vlaneseq
    %v392 = vshrl.u32 %v391, 7
    %v393 = vsub.s32 0, %v392
    %v394 = vrot.slane %v389, %v393
    %vm395 = vcmask 130048
    %v397 = vsel %vm395, %v383, 0
    %399 = vmatprep.subr.bf16.mxu0 0
    %400 = vmatpush1.bf16.msra.mxu0 %v384
    %401 = vmatprep.subr.bf16.mxu0 0
    %402 = vmatpush1.bf16.msra.mxu0 0
    %403 = vmatprep.subr.bf16.mxu0 0
    %404 = vmatpush1.bf16.msra.mxu0 0
    %405 = vmatprep.subr.bf16.mxu0 0
    %406 = vmatpush1.bf16.msra.mxu0 0
    %407 = vmatprep.subr.bf16.mxu0 0
    %408 = vmatpush1.bf16.msra.mxu0 0
    %409 = vmatprep.subr.bf16.mxu0 0
    %410 = vmatpush1.bf16.msra.mxu0 0
    %411 = vmatprep.subr.bf16.mxu0 0
    %412 = vmatpush1.bf16.msra.mxu0 0
    %413 = vmatprep.subr.bf16.mxu0 0
    %414 = vmatpush1.bf16.msra.mxu0 0
    %415 = vmatprep.subr.bf16.mxu0 0
    %416 = vmatpush1.bf16.msra.mxu0 0
    %417 = vmatprep.subr.bf16.mxu0 0
    %418 = vmatpush1.bf16.msra.mxu0 0
    %419 = vmatprep.subr.bf16.mxu0 0
    %420 = vmatpush1.bf16.msra.mxu0 0
    %421 = vmatprep.subr.bf16.mxu0 0
    %422 = vmatpush1.bf16.msra.mxu0 0
    %423 = vmatprep.subr.bf16.mxu0 0
    %424 = vmatpush1.bf16.msra.mxu0 0
    %425 = vmatprep.subr.bf16.mxu0 0
    %426 = vmatpush1.bf16.msra.mxu0 0
    %427 = vmatprep.subr.bf16.mxu0 0
    %428 = vmatpush1.bf16.msra.mxu0 0
    %429 = vmatprep.subr.bf16.mxu0 0
    %430 = vmatpush1.bf16.msra.mxu0 0
    %431 = vmatprep.mubr.bf16.mxu0 0
    %432 = vmatmul.mubr.bf16.gmra.mrb[0].mxu0 %v397
    %v433 = vpop.f32.mrb[0].mxu0
    %v434 = vadd.f32 %v394, %v433
    %v435 = vpop.f32.mrb[0].mxu0
    %v436 = vpop.f32.mrb[0].mxu0
    %v437 = vpop.f32.mrb[0].mxu0
    %438 = vdwg.mxu0
    %439 = vst [vmem:[#allocation3] sm:$0x1] %v434
    // Predicated region
    $region38: #{tpu_custom_call.1} parent=1 // pred_check
      _
    $region39: #{tpu_custom_call.1} parent=1 // pred_check_branch
      %441 = sbr.rel (0) target = $region41
    $region40: #{tpu_custom_call.1} parent=1 // pred_region
      %s443 = ssub.s32 16, 16
      %444 = vsyncadd [#allocation4], %s443
      %s446 = sshll.u32 [#allocation3], 4
      %s447 = int_to_ptr.vmem [resolvable:$true] %s446
      %449 = dma.vmem_to_hbm [thread:$0]  %s447, 16, %s9, [#allocation4]
    $region41: #{tpu_custom_call.1} parent=1 // pred_fallthru
      _
    // Predicated region
    $region42: #{tpu_custom_call.1} parent=1 // pred_check
      _
    $region43: #{tpu_custom_call.1} parent=1 // pred_check_branch
      %451 = sbr.rel (0) target = $region45
    $region44: #{tpu_custom_call.1} parent=1 // pred_region
      %452 = dma.done [#allocation4], 16
    $region45: #{tpu_custom_call.1} parent=1 // pred_fallthru
      _
    %453 = vsyncpa [#allocation4], 1

</llo_original>
